<compile_context>
chip_gen: v7x
topology: tpu7x:2x2x1
jax: 0.10.0
libtpu: 0.0.40
codegen_flags: <defaults>
</compile_context>

<pallas_src>
import functools

import jax
import jax.numpy as jnp
import numpy as np
from jax.experimental import pallas as pl
from jax.experimental.pallas import tpu as pltpu


def _largest_divisor_leq(n, cap):
    """Largest divisor of n that is <= cap (and >= 1)."""
    cap = int(max(1, min(n, cap)))
    for d in range(cap, 0, -1):
        if n % d == 0:
            return d
    return 1


# --------------------------------------------------------------------------------------
# BatchNorm batch-statistics kernel: one pass over x producing per-channel sum and
# sum-of-squares (accumulated across the grid into a resident (Cin, 1) output block).
# --------------------------------------------------------------------------------------
def _bn_stats_kernel(x_ref, s1_ref, s2_ref):
    @pl.when(pl.program_id(0) == 0)
    def _():
        s1_ref[...] = jnp.zeros_like(s1_ref)
        s2_ref[...] = jnp.zeros_like(s2_ref)

    x = x_ref[...]                                                # (NBs, Cin, HW) f32
    # Lane reduction first (XLU), then the small leading image dim (VPU adds).
    s1_ref[...] += jnp.sum(jnp.sum(x, axis=-1, keepdims=True), axis=0)
    s2_ref[...] += jnp.sum(jnp.sum(x * x, axis=-1, keepdims=True), axis=0)


# --------------------------------------------------------------------------------------
# Main fused kernel: BN(scale,bias) -> ReLU -> per-unit [2x2 sum-pool matmul -> 1x1 conv]
# --------------------------------------------------------------------------------------
def _transition_kernel(scale_ref, bias_ref, w_ref, q_ref, x_ref, o_ref, *,
                       nb, tu, unit, cin, use_mxu_conv):
    uo = unit // 4
    q = q_ref[...]            # (U, U/4) 0/1 pool matrix (bf16 on the MXU path, exact)
    w = w_ref[...]            # (Cout, Cin), 0.25 avg-pool divisor already folded in
    scale = scale_ref[...]    # (Cin, 1) folded BN scale
    bias = bias_ref[...]      # (Cin, 1) folded BN bias

    for b in range(nb):                                           # static unroll, NB small
        x = x_ref[b]                                              # (Cin, S) f32
        # Fused BN + ReLU on the VPU in f32 (full 128-lane density: S is flat spatial).
        act = jnp.maximum(x * scale + bias, 0.0)
        act = act.astype(q.dtype)                                 # bf16 cast on MXU path only
        for u in range(tu):                                       # static unroll, tu <= 8
            # 128-aligned static lane slice of the activation: no relayout, just vreg picks.
            a_u = act[:, u * unit:(u + 1) * unit]                 # (Cin, U)
            # 2x2 sum-pool of g row-pairs as a constant-size one-hot matmul (f32 accum).
            pooled = jnp.dot(a_u, q, preferred_element_type=jnp.float32)      # (Cin, U/4)
            if use_mxu_conv:
                # 1x1 conv on the MXU, bf16 operands, f32 accumulator.
                out = jnp.dot(w, pooled.astype(w.dtype),
                              preferred_element_type=jnp.float32)             # (Cout, U/4)
            else:
                # Tiny-Cin path: unrolled f32 broadcast multiply-adds on the VPU
                # (avoids a K<=8 MXU matmul; keeps the MXU drain off the critical path).
                out = w[:, 0:1] * pooled[0:1, :]
                for ci in range(1, cin):
                    out = out + w[:, ci:ci + 1] * pooled[ci:ci + 1, :]
            # Aligned, full-width (128-lane or full-row) unmasked store.
            o_ref[b, :, u * uo:(u + 1) * uo] = out.astype(o_ref.dtype)


def transition_forward(x_nchw, conv_weight, gamma, beta, eps=1e-5):
    """x_nchw: (N, Cin, H, W) f32; conv_weight: (Cout, Cin, 1, 1) f32."""
    N, Cin, H, W = x_nchw.shape
    Cout = conv_weight.shape[0]
    assert H % 2 == 0 and W % 2 == 0, "avg_pool2d(2): H and W must be even"

    HW = H * W
    HWo = HW // 4
    # Free, contiguous reshape: stay channel-major (NCHW), flat spatial fills the lanes.
    x_flat = x_nchw.reshape(N, Cin, HW)

    # ----------------------------- tiling selection ------------------------------------
    IN_TARGET = 2 * 1024 * 1024  # per-step input-block byte target (amortizes grid overhead
    #                              while keeping double-buffered VMEM well under the scoped
    #                              limit on every generation, incl. v7x's 64 MiB physical).

    # Pooling unit: g consecutive row-pairs flattened -> U input lanes -> U/4 pooled lanes.
    # g is chosen so U ~ 512 (pooled chunk = one full 128-lane tile) when the image allows.
    g = _largest_divisor_leq(H // 2, max(1, 512 // (2 * W)))
    U = 2 * W * g
    Uo = U // 4

    # Units per grid step (spatial chunk S = TU*U), capped for VMEM and unroll size.
    tu_cap = max(1, min(8, IN_TARGET // (Cin * U * 4)))
    TU = _largest_divisor_leq(HW // U, tu_cap)
    S = TU * U
    if S % 512 != 0 and S != HW:
        # Keep blocks (8,128)-aligned for odd image widths: fall back to whole-image chunks.
        TU = HW // U
        S = HW
    n_s = HW // S

    # Images per block: only batch when one chunk already covers the whole image (CIFAR
    # scale), so the grid collapses toward N/NB fat steps instead of many tiny ones.
    if n_s == 1:
        nb_cap = max(1, min(4, IN_TARGET // (Cin * HW * 4)))
        NB = _largest_divisor_leq(N, nb_cap)
    else:
        NB = 1

    # -------------------- BN batch stats: single fused pass over x ---------------------
    NBs = _largest_divisor_leq(N, max(1, IN_TARGET // (Cin * HW * 4)))
    s1, s2 = pl.pallas_call(
        _bn_stats_kernel,
        out_shape=(jax.ShapeDtypeStruct((Cin, 1), jnp.float32),
                   jax.ShapeDtypeStruct((Cin, 1), jnp.float32)),
        grid_spec=pltpu.PrefetchScalarGridSpec(
            num_scalar_prefetch=0,
            grid=(N // NBs,),
            in_specs=[pl.BlockSpec((NBs, Cin, HW), lambda n: (n, 0, 0))],
            out_specs=(pl.BlockSpec((Cin, 1), lambda n: (0, 0)),
                       pl.BlockSpec((Cin, 1), lambda n: (0, 0))),
        ),
        compiler_params=pltpu.CompilerParams(dimension_semantics=("arbitrary",)),
    )(x_flat)

    cnt = float(N * HW)
    mean = s1[:, 0] / cnt
    # Biased variance (PyTorch normalizes with it); clamp single-pass cancellation.
    var = jnp.maximum(s2[:, 0] / cnt - mean * mean, 0.0)
    scale = gamma * jax.lax.rsqrt(var + eps)
    bias = beta - mean * scale
    # TODO(synk): running_mean/running_var buffer updates are stateful and omitted
    # (they do not affect the forward output).

    # --------------------------- weights / pooling matrix ------------------------------
    use_mxu_conv = Cin > 8
    mm_dtype = jnp.bfloat16 if use_mxu_conv else jnp.float32
    # 1x1 conv weight with the 2x2 average divisor folded in (0.25 is exact in bf16).
    w = (conv_weight.reshape(Cout, Cin) * 0.25).astype(mm_dtype)

    # Per-unit 0/1 pooling matrix: flat position k inside a unit of g row-pairs maps to
    # pooled position (row-pair index)*(W/2) + (column)//2.  Exactly 4 ones per column.
    k = np.arange(U)
    m = (k // (2 * W)) * (W // 2) + (k % W) // 2
    q = jnp.asarray(np.eye(Uo, dtype=np.float32)[m], dtype=mm_dtype)          # (U, U/4)

    kernel = functools.partial(_transition_kernel, nb=NB, tu=TU, unit=U,
                               cin=Cin, use_mxu_conv=use_mxu_conv)

    # Per-step VMEM: 2*NB*Cin*S*4 (double-buffered input) + 2*NB*Cout*(S/4)*4 (output)
    # + weights + pool matrix  <= ~6 MiB with the caps above -> fits the default scoped
    # VMEM limit on v5e/v6e/v7x without raising vmem_limit_bytes.
    out_flat = pl.pallas_call(
        kernel,
        out_shape=jax.ShapeDtypeStruct((N, Cout, HWo), jnp.float32),
        grid_spec=pltpu.PrefetchScalarGridSpec(
            num_scalar_prefetch=0,
            grid=(N // NB, n_s),
            in_specs=[
                pl.BlockSpec((Cin, 1), lambda nb, s: (0, 0)),          # folded BN scale
                pl.BlockSpec((Cin, 1), lambda nb, s: (0, 0)),          # folded BN bias
                pl.BlockSpec((Cout, Cin), lambda nb, s: (0, 0)),       # conv weight * 0.25
                pl.BlockSpec((U, Uo), lambda nb, s: (0, 0)),           # per-unit pool matrix
                pl.BlockSpec((NB, Cin, S), lambda nb, s: (nb, 0, s)),  # input spatial chunk
            ],
            out_specs=pl.BlockSpec((NB, Cout, S // 4), lambda nb, s: (nb, 0, s)),
        ),
        compiler_params=pltpu.CompilerParams(
            # No cross-step accumulation: every step writes a disjoint output block, so
            # both axes are parallel (v7x megacore shards them across its 2 TensorCores).
            dimension_semantics=("parallel", "parallel"),
        ),
    )(scale.reshape(Cin, 1), bias.reshape(Cin, 1), w, q, x_flat)

    # Free reshape back to the NCHW output layout.
    return out_flat.reshape(N, Cout, H // 2, W // 2)


def transition_reference(x, conv_weight, gamma, beta, eps=1e-5):
    """Pure-JAX reference (NCHW) mirroring the PyTorch forward."""
    mean = jnp.mean(x, axis=(0, 2, 3), keepdims=True)
    var = jnp.var(x, axis=(0, 2, 3), keepdims=True)
    out = (x - mean) / jnp.sqrt(var + eps)
    out = out * gamma.reshape(1, -1, 1, 1) + beta.reshape(1, -1, 1, 1)
    out = jnp.maximum(out, 0.0)
    out = jax.lax.conv_general_dilated(
        out, conv_weight, window_strides=(1, 1), padding="VALID",
        dimension_numbers=("NCHW", "OIHW", "NCHW"))
    out = jax.lax.reduce_window(out, 0.0, jax.lax.add,
                                (1, 1, 2, 2), (1, 1, 2, 2), "VALID") / 4.0
    return out


if __name__ == "__main__":
    def run_case(N, Cin, H, W, Cout, rtol, atol):
        key = jax.random.PRNGKey(0)
        kx, kw, kg, kb = jax.random.split(key, 4)
        x = jax.random.normal(kx, (N, Cin, H, W), dtype=jnp.float32)
        conv_weight = jax.random.normal(kw, (Cout, Cin, 1, 1), dtype=jnp.float32) / np.sqrt(Cin)
        gamma = 1.0 + 0.1 * jax.random.normal(kg, (Cin,), dtype=jnp.float32)
        beta = 0.1 * jax.random.normal(kb, (Cin,), dtype=jnp.float32)

        out = jax.block_until_ready(transition_forward(x, conv_weight, gamma, beta))
        ref = jax.block_until_ready(transition_reference(x, conv_weight, gamma, beta))
        np.testing.assert_allclose(np.asarray(out), np.asarray(ref), rtol=rtol, atol=atol)
        assert out.shape == (N, Cout, H // 2, W // 2)

    # Tiny-Cin path (all-f32, VPU conv) at the module's demo scale -> tight tolerance.
    run_case(N=2, Cin=4, H=16, W=16, Cout=8, rtol=1e-4, atol=1e-4)
    # MXU bf16 path (realistic transition-style channel counts, kept small for the demo);
    # looser tolerance accounts for the bf16 operand casts (f32 accumulation).
    run_case(N=2, Cin=32, H=16, W=16, Cout=16, rtol=5e-2, atol=5e-2)

    print("KERNEL_OK")
</pallas_src>

<mosaic_0001>
module attributes {stable_mosaic.version = 11 : i64} {
  func.func @_bn_stats_kernel(%arg0: i32, %arg1: memref<2x4x256xf32, #tpu.memory_space<vmem>>, %arg2: memref<4x1xf32, #tpu.memory_space<vmem>>, %arg3: memref<4x1xf32, #tpu.memory_space<vmem>>) attributes {dimension_semantics = [#tpu.dimension_semantics<arbitrary>], iteration_bounds = array<i64: 1>, scalar_prefetch = 0 : i64, scratch_operands = 0 : i64, tpu.core_type = #tpu.core_type<tc>, window_params = [{transform_indices = @transform_0, window_bounds = array<i64: 2, 4, 256>}, {pipeline_mode = #tpu.pipeline_mode<synchronous>, transform_indices = @transform_1, window_bounds = array<i64: 4, 1>}, {pipeline_mode = #tpu.pipeline_mode<synchronous>, transform_indices = @transform_2, window_bounds = array<i64: 4, 1>}]} {
    %c0_i32 = arith.constant 0 : i32
    %0 = arith.cmpi eq, %arg0, %c0_i32 : i32
    %1 = arith.extui %0 : i1 to i32
    %c0_i32_0 = arith.constant 0 : i32
    %2 = arith.cmpi ne, %1, %c0_i32_0 : i32
    scf.if %2 {
      %cst_14 = arith.constant 0.000000e+00 : f32
      %17 = vector.broadcast %cst_14 : f32 to vector<4x1xf32>
      %c0_15 = arith.constant 0 : index
      %c0_16 = arith.constant 0 : index
      %18 = vector.load %arg2[%c0_15, %c0_16] : memref<4x1xf32, #tpu.memory_space<vmem>>, vector<4x1xf32>
      tpu.vector_store %arg2[%c0_15, %c0_16], %17 {strides = array<i32>} : memref<4x1xf32, #tpu.memory_space<vmem>>, vector<4x1xf32>,
      %cst_17 = arith.constant 0.000000e+00 : f32
      %19 = vector.broadcast %cst_17 : f32 to vector<4x1xf32>
      %c0_18 = arith.constant 0 : index
      %c0_19 = arith.constant 0 : index
      %20 = vector.load %arg3[%c0_18, %c0_19] : memref<4x1xf32, #tpu.memory_space<vmem>>, vector<4x1xf32>
      tpu.vector_store %arg3[%c0_18, %c0_19], %19 {strides = array<i32>} : memref<4x1xf32, #tpu.memory_space<vmem>>, vector<4x1xf32>,
    } else {
    }
    %c0 = arith.constant 0 : index
    %c0_1 = arith.constant 0 : index
    %c0_2 = arith.constant 0 : index
    %3 = vector.load %arg1[%c0, %c0_1, %c0_2] : memref<2x4x256xf32, #tpu.memory_space<vmem>>, vector<2x4x256xf32>
    %c0_3 = arith.constant 0 : index
    %c0_4 = arith.constant 0 : index
    %4 = vector.load %arg2[%c0_3, %c0_4] : memref<4x1xf32, #tpu.memory_space<vmem>>, vector<4x1xf32>
    %cst = arith.constant dense<0.000000e+00> : vector<2x4xf32>
    %5 = vector.multi_reduction <add>, %3, %cst [2] : vector<2x4x256xf32> to vector<2x4xf32>
    %6 = vector.shape_cast %5 : vector<2x4xf32> to vector<2x4x1xf32>
    %cst_5 = arith.constant dense<0.000000e+00> : vector<4x1xf32>
    %7 = vector.multi_reduction <add>, %6, %cst_5 [0] : vector<2x4x1xf32> to vector<4x1xf32>
    %8 = arith.addf %4, %7 : vector<4x1xf32>
    %c0_6 = arith.constant 0 : index
    %c0_7 = arith.constant 0 : index
    %9 = vector.load %arg2[%c0_6, %c0_7] : memref<4x1xf32, #tpu.memory_space<vmem>>, vector<4x1xf32>
    tpu.vector_store %arg2[%c0_6, %c0_7], %8 {strides = array<i32>} : memref<4x1xf32, #tpu.memory_space<vmem>>, vector<4x1xf32>,
    %c0_8 = arith.constant 0 : index
    %c0_9 = arith.constant 0 : index
    %10 = vector.load %arg3[%c0_8, %c0_9] : memref<4x1xf32, #tpu.memory_space<vmem>>, vector<4x1xf32>
    %11 = arith.mulf %3, %3 : vector<2x4x256xf32>
    %cst_10 = arith.constant dense<0.000000e+00> : vector<2x4xf32>
    %12 = vector.multi_reduction <add>, %11, %cst_10 [2] : vector<2x4x256xf32> to vector<2x4xf32>
    %13 = vector.shape_cast %12 : vector<2x4xf32> to vector<2x4x1xf32>
    %cst_11 = arith.constant dense<0.000000e+00> : vector<4x1xf32>
    %14 = vector.multi_reduction <add>, %13, %cst_11 [0] : vector<2x4x1xf32> to vector<4x1xf32>
    %15 = arith.addf %10, %14 : vector<4x1xf32>
    %c0_12 = arith.constant 0 : index
    %c0_13 = arith.constant 0 : index
    %16 = vector.load %arg3[%c0_12, %c0_13] : memref<4x1xf32, #tpu.memory_space<vmem>>, vector<4x1xf32>
    tpu.vector_store %arg3[%c0_12, %c0_13], %15 {strides = array<i32>} : memref<4x1xf32, #tpu.memory_space<vmem>>, vector<4x1xf32>,
    return
  }
  func.func @transform_0(%arg0: i32) -> (i32, i32, i32) {
    %c0_i32 = arith.constant 0 : i32
    %c0_i32_0 = arith.constant 0 : i32
    %c0_i32_1 = arith.constant 0 : i32
    return %arg0, %c0_i32, %c0_i32_0 : i32, i32, i32
  }
  func.func @transform_1(%arg0: i32) -> (i32, i32) {
    %c0_i32 = arith.constant 0 : i32
    %c0_i32_0 = arith.constant 0 : i32
    %c0_i32_1 = arith.constant 0 : i32
    return %c0_i32, %c0_i32_0 : i32, i32
  }
  func.func @transform_2(%arg0: i32) -> (i32, i32) {
    %c0_i32 = arith.constant 0 : i32
    %c0_i32_0 = arith.constant 0 : i32
    %c0_i32_1 = arith.constant 0 : i32
    return %c0_i32, %c0_i32_0 : i32, i32
  }
}

</mosaic_0001>

<llo_original>
// kernel: tpu_custom_call.1
$region0: #{tpu_custom_call.1}
  #allocation0 [shape = 'u32[]', space=smem, size = 0x4, offset = 0x4, fixed_abs, tag = 'smem constant byte address 0x4 - core index']
  #allocation1 [shape = 'u32[144,128]{1,0:T(1,128)}', space=vmem, size = 0x12000, scoped, tag = 'internal scratch']
  %s0 = inlined_call_operand.hbm [shape: f32[2,4,256], index: 0, kind: input, shape index: {}]
  %s1 = inlined_call_operand.vmem [shape: f32[4,1], index: 1, kind: output, shape index: {0}]
  %s2 = inlined_call_operand.vmem [shape: f32[4,1], index: 2, kind: output, shape index: {1}]
  %3 = xla_tuple %s1, %s2
  %s4 = sld [smem:[#allocation0]]
  $region30: #{tpu_custom_call.1} parent=0
    _
  %s6 = ssub.s32 1, %s4
  %s7 = scalar_select 0, %s6, %s4
  $region1: #{tpu_custom_call.1} parent=0
    #allocation2 [shape = 'u8[8192]{0}', space=vmem, size = 0x2000, scoped, tag = 'input window, operand 0, single buffered']
    #allocation3 [shape = 's32[1]{0}', space=sflag, size = 0x4, scoped, tag = 'scoped memory for tpu_custom_call.1']
    %8 = vsyncpa [#allocation3], 0
    // Predicated region
    $region2: #{tpu_custom_call.1} parent=1 // pred_check
      _
    $region3: #{tpu_custom_call.1} parent=1 // pred_check_branch
      %10 = sbr.rel (0) target = $region5
    $region4: #{tpu_custom_call.1} parent=1 // pred_region
      %s12 = ssub.s32 256, 256
      %13 = vsyncadd [#allocation3], %s12
      %s14 = sshll.u32 [#allocation2], 4
      %s15 = int_to_ptr.vmem [resolvable:$true] %s14
      %20 = dma.hbm_to_vmem [thread:$0]  %s0, 256, %s15, [#allocation3], 128, 128, 8
    $region5: #{tpu_custom_call.1} parent=1 // pred_fallthru
      _
    // Predicated region
    $region6: #{tpu_custom_call.1} parent=1 // pred_check
      _
    $region7: #{tpu_custom_call.1} parent=1 // pred_check_branch
      %22 = sbr.rel (0) target = $region9
    $region8: #{tpu_custom_call.1} parent=1 // pred_region
      %23 = dma.done [#allocation3], 256
    $region9: #{tpu_custom_call.1} parent=1 // pred_fallthru
      _
    %p24 = scmp.eq.s32.totalorder 0, 0
    // Predicated region
    $region10: #{tpu_custom_call.1} parent=1 // pred_check
      %p25 = pneg %p24
    $region11: #{tpu_custom_call.1} parent=1 // pred_check_branch
      %27 = sbr.rel (%p25) target = $region13
    $region12: #{tpu_custom_call.1} parent=1 // pred_region
      %vm28 = vcmask 3072
      %29 = vst.msk [vmem:[%s1] sm:$0xf] %vm28, 0.0
      %30 = vst.msk [vmem:[%s2] sm:$0xf] %vm28, 0.0
    $region13: #{tpu_custom_call.1} parent=1 // pred_fallthru
      _
    %v31 = vld [vmem:[#allocation2] sm:$0xff]
    %v32 = vld [vmem:[#allocation2 + $0x8] sm:$0xff]
    %v33 = vld [vmem:[%s1] sm:$0xf]
    %v36 = vcombine.high %v31, %v31
    %v37 = vcombine.high %v32, %v32
    %vm40 = vcmask 1043456
    %v41 = vsel %vm40, %v31, 0.0
    %v42 = vsel %vm40, %v36, 0.0
    %v43 = vadd.f32 %v41, %v42
    %44 = vadd.xlane.f32.xlu0 %v43
    %v45 = vpop.xlane.xlu0 %44
    %v46 = vsel %vm40, %v32, 0.0
    %v47 = vsel %vm40, %v37, 0.0
    %v48 = vadd.f32 %v46, %v47
    %49 = vadd.xlane.f32.xlu0 %v48
    %v50 = vpop.xlane.xlu0 %49
    %v51 = vsel %vm40, %v45, 0.0
    %v52 = vsel %vm40, %v50, 0.0
    %v53 = vadd.f32 %v51, %v52
    %v54 = vadd.f32 %v33, %v53
    %vm55 = vcmask 3072
    %56 = vst.msk [vmem:[%s1] sm:$0xf] %vm55, %v54
    %v57 = vld [vmem:[%s2] sm:$0xf]
    %v58 = vmul.f32 %v31, %v31
    %v59 = vmul.f32 %v32, %v32
    %v62 = vcombine.high %v58, %v58
    %v63 = vcombine.high %v59, %v59
    %v66 = vsel %vm40, %v58, 0.0
    %v67 = vsel %vm40, %v62, 0.0
    %v68 = vadd.f32 %v66, %v67
    %69 = vadd.xlane.f32.xlu0 %v68
    %v70 = vpop.xlane.xlu0 %69
    %v71 = vsel %vm40, %v59, 0.0
    %v72 = vsel %vm40, %v63, 0.0
    %v73 = vadd.f32 %v71, %v72
    %74 = vadd.xlane.f32.xlu0 %v73
    %v75 = vpop.xlane.xlu0 %74
    %v76 = vsel %vm40, %v70, 0.0
    %v77 = vsel %vm40, %v75, 0.0
    %v78 = vadd.f32 %v76, %v77
    %v79 = vadd.f32 %v57, %v78
    %80 = vst.msk [vmem:[%s2] sm:$0xf] %vm55, %v79
    // Predicated region
    $region14: #{tpu_custom_call.1} parent=1 // pred_check
      _
    $region15: #{tpu_custom_call.1} parent=1 // pred_check_branch
      %82 = sbr.rel (0) target = $region17
    $region16: #{tpu_custom_call.1} parent=1 // pred_region
      _
    $region17: #{tpu_custom_call.1} parent=1 // pred_fallthru
      _
    // Predicated region
    $region18: #{tpu_custom_call.1} parent=1 // pred_check
      _
    $region19: #{tpu_custom_call.1} parent=1 // pred_check_branch
      %84 = sbr.rel (0) target = $region21
    $region20: #{tpu_custom_call.1} parent=1 // pred_region
      _
    $region21: #{tpu_custom_call.1} parent=1 // pred_fallthru
      _
    // Predicated region
    $region22: #{tpu_custom_call.1} parent=1 // pred_check
      _
    $region23: #{tpu_custom_call.1} parent=1 // pred_check_branch
      %86 = sbr.rel (0) target = $region25
    $region24: #{tpu_custom_call.1} parent=1 // pred_region
      _
    $region25: #{tpu_custom_call.1} parent=1 // pred_fallthru
      _
    // Predicated region
    $region26: #{tpu_custom_call.1} parent=1 // pred_check
      _
    $region27: #{tpu_custom_call.1} parent=1 // pred_check_branch
      %88 = sbr.rel (0) target = $region29
    $region28: #{tpu_custom_call.1} parent=1 // pred_region
      _
    $region29: #{tpu_custom_call.1} parent=1 // pred_fallthru
      _
    %89 = vsyncpa [#allocation3], 1

</llo_original>
